<compile_context>
chip_gen: v7x
topology: tpu7x:2x2x1
jax: 0.10.0
libtpu: 0.0.40
codegen_flags: <defaults>
</compile_context>

<pallas_src>
import functools
import math

import jax
import jax.numpy as jnp
from jax import lax
from jax.experimental import pallas as pl
from jax.experimental.pallas import tpu as pltpu

_LN_EPS = 1e-5


# ---------------------------------------------------------------------------
# Hardware-aware defaults
# ---------------------------------------------------------------------------
def _hw_defaults():
    cap = 64 * 1024 * 1024  # conservative fallback (v7x per-core VMEM)
    try:
        cap = int(pltpu.get_tpu_info().vmem_capacity_bytes)
    except Exception:
        pass
    big = cap >= 100 * 1024 * 1024  # v5e / v6e (128 MiB) vs v7x (64 MiB)
    vmem_limit = max(32 * 1024 * 1024, min(cap - 16 * 1024 * 1024, 100 * 1024 * 1024))
    return dict(
        vmem_limit=int(vmem_limit),
        tile_n=512 if big else 256,    # row tile over B*S
        tile_k=512,                    # model-dim contraction chunk
        tile_h=1024 if big else 512,   # FFN hidden chunk
        tile_q=256,                    # attention query tile
    )


# ---------------------------------------------------------------------------
# Small helpers
# ---------------------------------------------------------------------------
def _round_up(x, m):
    return ((x + m - 1) // m) * m


def _pick_row_tile(n_rows, target):
    tile = max(8, min(_round_up(target, 8), _round_up(n_rows, 8)))
    return tile, _round_up(n_rows, tile)


def _pick_div_tile(total, target, align=128):
    """Largest t <= target dividing `total` that is a multiple of `align` (or the full dim)."""
    if total <= target:
        return total
    t = (min(target, total) // align) * align
    while t >= align:
        if total % t == 0:
            return t
        t -= align
    return total  # no aligned divisor; fall back to a single chunk


def _pick_q_tile(seq, target):
    if seq <= target:
        return seq
    t = (min(target, seq) // 8) * 8
    while t >= 8:
        if seq % t == 0:
            return t
        t -= 8
    return seq


def _pick_groups_per_block(n_groups, gd, dh, d_model, kv_dim):
    """Smallest #groups per attention step keeping both column-block widths lane-legal."""
    for gpb in range(1, n_groups + 1):
        if n_groups % gpb:
            continue
        qw, kw = gpb * gd * dh, gpb * dh
        if (qw % 128 == 0 or qw == d_model) and (kw % 128 == 0 or kw == kv_dim):
            return gpb
    return n_groups


def _pad_rows(x2d, n_pad):
    n = x2d.shape[0]
    if n_pad == n:
        return x2d
    return jnp.pad(x2d, ((0, n_pad - n), (0, 0)))


def _layernorm_f32(x, gamma, beta):
    mu = jnp.mean(x, axis=-1, keepdims=True)
    var = jnp.mean(jnp.square(x - mu), axis=-1, keepdims=True)
    return (x - mu) * lax.rsqrt(var + _LN_EPS) * gamma + beta


def _compiler_params(semantics, vmem_limit):
    return pltpu.CompilerParams(dimension_semantics=semantics,
                                vmem_limit_bytes=int(vmem_limit))


# ---------------------------------------------------------------------------
# Kernel 1: LayerNorm1 + Q/K/V projections (contraction-tiled)
# ---------------------------------------------------------------------------
def ln_qkv_kernel(x_ref, g_ref, bln_ref, wq_ref, wk_ref, wv_ref, bq_ref, bk_ref, bv_ref,
                  q_ref, k_ref, v_ref, xn_ref, aq_ref, ak_ref, av_ref, *,
                  d_model, tile_k, compute_dtype):
    kc = pl.program_id(1)

    @pl.when(kc == 0)
    def _():
        x = x_ref[...].astype(jnp.float32)
        xn_ref[...] = _layernorm_f32(x, g_ref[...], bln_ref[...]).astype(xn_ref.dtype)
        aq_ref[...] = jnp.zeros_like(aq_ref)
        ak_ref[...] = jnp.zeros_like(ak_ref)
        av_ref[...] = jnp.zeros_like(av_ref)

    if tile_k == d_model:          # single contraction chunk (small models / test config)
        xc = xn_ref[...]
    else:
        start = pl.multiple_of(kc * tile_k, tile_k)
        xc = xn_ref[:, pl.ds(start, tile_k)]

    aq_ref[...] += jnp.dot(xc, wq_ref[...], preferred_element_type=jnp.float32)
    ak_ref[...] += jnp.dot(xc, wk_ref[...], preferred_element_type=jnp.float32)
    av_ref[...] += jnp.dot(xc, wv_ref[...], preferred_element_type=jnp.float32)

    @pl.when(kc == pl.num_programs(1) - 1)
    def _():
        q_ref[...] = (aq_ref[...] + bq_ref[...]).astype(q_ref.dtype)
        k_ref[...] = (ak_ref[...] + bk_ref[...]).astype(k_ref.dtype)
        v_ref[...] = (av_ref[...] + bv_ref[...]).astype(v_ref.dtype)


def ln_qkv_forward(x2d, gamma, beta, w_q, w_k, w_v, b_q, b_k, b_v, *,
                   compute_dtype, tile_n, tile_k, vmem_limit):
    n_pad, d = x2d.shape
    kv_dim = w_k.shape[1]
    tk = _pick_div_tile(d, tile_k)
    kernel = functools.partial(ln_qkv_kernel, d_model=d, tile_k=tk,
                               compute_dtype=compute_dtype)
    return pl.pallas_call(
        kernel,
        out_shape=(jax.ShapeDtypeStruct((n_pad, d), compute_dtype),
                   jax.ShapeDtypeStruct((n_pad, kv_dim), compute_dtype),
                   jax.ShapeDtypeStruct((n_pad, kv_dim), compute_dtype)),
        grid_spec=pltpu.PrefetchScalarGridSpec(
            num_scalar_prefetch=0,
            grid=(n_pad // tile_n, d // tk),
            in_specs=[
                pl.BlockSpec((tile_n, d), lambda i, k: (i, 0)),     # x (full row for LN)
                pl.BlockSpec((1, d), lambda i, k: (0, 0)),          # gamma
                pl.BlockSpec((1, d), lambda i, k: (0, 0)),          # beta
                pl.BlockSpec((tk, d), lambda i, k: (k, 0)),         # w_q chunk
                pl.BlockSpec((tk, kv_dim), lambda i, k: (k, 0)),    # w_k chunk
                pl.BlockSpec((tk, kv_dim), lambda i, k: (k, 0)),    # w_v chunk
                pl.BlockSpec((1, d), lambda i, k: (0, 0)),          # b_q
                pl.BlockSpec((1, kv_dim), lambda i, k: (0, 0)),     # b_k
                pl.BlockSpec((1, kv_dim), lambda i, k: (0, 0)),     # b_v
            ],
            out_specs=[
                pl.BlockSpec((tile_n, d), lambda i, k: (i, 0)),
                pl.BlockSpec((tile_n, kv_dim), lambda i, k: (i, 0)),
                pl.BlockSpec((tile_n, kv_dim), lambda i, k: (i, 0)),
            ],
            scratch_shapes=[
                pltpu.VMEM((tile_n, d), compute_dtype),    # normalized activations
                pltpu.VMEM((tile_n, d), jnp.float32),      # q accumulator
                pltpu.VMEM((tile_n, kv_dim), jnp.float32),
                pltpu.VMEM((tile_n, kv_dim), jnp.float32),
            ]),
        compiler_params=_compiler_params(("parallel", "arbitrary"), vmem_limit),
    )(x2d, gamma, beta, w_q, w_k, w_v, b_q, b_k, b_v)


# ---------------------------------------------------------------------------
# Kernel 2: GQA attention core (one (batch, group-block, query-tile) per step)
# ---------------------------------------------------------------------------
def attention_kernel(q_ref, k_ref, v_ref, o_ref, *, scale, heads_per_block, gd, dh,
                     compute_dtype, approx_recip):
    outs = []
    for h in range(heads_per_block):
        g = h // gd  # local group index within this block; K/V stay resident for all heads
        qh = (q_ref[:, h * dh:(h + 1) * dh].astype(jnp.float32) * scale).astype(compute_dtype)
        kg = k_ref[:, g * dh:(g + 1) * dh].astype(compute_dtype)       # (S, dh)
        vg = v_ref[:, g * dh:(g + 1) * dh].astype(compute_dtype)
        s = lax.dot_general(qh, kg, (((1,), (1,)), ((), ())),
                            preferred_element_type=jnp.float32)        # (tq, S)
        s = s - jnp.max(s, axis=-1, keepdims=True)
        p = jnp.exp(s)
        denom = jnp.sum(p, axis=-1, keepdims=True)
        if approx_recip:
            p = p * pl.reciprocal(denom, approx=True)   # EUP slot; frees the VALU
        else:
            p = p / denom
        # Attention dropout is eval-mode identity; the module never applies its causal mask.
        outs.append(jnp.dot(p.astype(compute_dtype), vg,
                            preferred_element_type=jnp.float32))       # (tq, dh)
    o = outs[0] if len(outs) == 1 else jnp.concatenate(outs, axis=-1)
    o_ref[...] = o.astype(o_ref.dtype)                  # single lane-dense store


def attention_forward(q2d, k2d, v2d, *, batch, seq, n_heads, n_groups, head_dim,
                      compute_dtype, tile_q, vmem_limit):
    n_pad, d = q2d.shape
    kv_dim = k2d.shape[1]
    gd = n_heads // n_groups
    gpb = _pick_groups_per_block(n_groups, gd, head_dim, d, kv_dim)
    tq = _pick_q_tile(seq, tile_q)
    sq = seq // tq
    qw = gpb * gd * head_dim     # q / out column-block width
    kw = gpb * head_dim          # k / v column-block width
    kernel = functools.partial(
        attention_kernel, scale=1.0 / math.sqrt(head_dim),
        heads_per_block=gpb * gd, gd=gd, dh=head_dim,
        compute_dtype=compute_dtype,
        approx_recip=(compute_dtype != jnp.float32))
    return pl.pallas_call(
        kernel,
        out_shape=jax.ShapeDtypeStruct((n_pad, d), compute_dtype),
        grid_spec=pltpu.PrefetchScalarGridSpec(
            num_scalar_prefetch=0,
            grid=(batch, n_groups // gpb, sq),
            in_specs=[
                pl.BlockSpec((tq, qw), lambda b, g, qt: (b * sq + qt, g)),   # q rows of tile
                pl.BlockSpec((seq, kw), lambda b, g, qt: (b, g)),            # K (whole seq)
                pl.BlockSpec((seq, kw), lambda b, g, qt: (b, g)),            # V (whole seq)
            ],
            out_specs=pl.BlockSpec((tq, qw), lambda b, g, qt: (b * sq + qt, g)),
        ),
        compiler_params=_compiler_params(("parallel", "parallel", "parallel"), vmem_limit),
    )(q2d, k2d, v2d)


# ---------------------------------------------------------------------------
# Kernel 3: output projection W_o (contraction-tiled) + first residual
# ---------------------------------------------------------------------------
def proj_residual_kernel(a_ref, res_ref, w_ref, b_ref, o_ref, acc_ref, *, compute_dtype):
    kc = pl.program_id(1)

    @pl.when(kc == 0)
    def _():
        acc_ref[...] = jnp.zeros_like(acc_ref)

    acc_ref[...] += jnp.dot(a_ref[...].astype(compute_dtype), w_ref[...],
                            preferred_element_type=jnp.float32)

    @pl.when(kc == pl.num_programs(1) - 1)
    def _():
        y = res_ref[...].astype(jnp.float32) + acc_ref[...] + b_ref[...]
        o_ref[...] = y.astype(o_ref.dtype)


def proj_residual_forward(attn2d, res2d, w, bias, *, compute_dtype, tile_n, tile_k, vmem_limit):
    n_pad, d_in = attn2d.shape
    d_out = w.shape[1]
    tk = _pick_div_tile(d_in, tile_k)
    kernel = functools.partial(proj_residual_kernel, compute_dtype=compute_dtype)
    return pl.pallas_call(
        kernel,
        out_shape=jax.ShapeDtypeStruct((n_pad, d_out), compute_dtype),
        grid_spec=pltpu.PrefetchScalarGridSpec(
            num_scalar_prefetch=0,
            grid=(n_pad // tile_n, d_in // tk),
            in_specs=[
                pl.BlockSpec((tile_n, tk), lambda i, k: (i, k)),      # attention out chunk
                pl.BlockSpec((tile_n, d_out), lambda i, k: (i, 0)),   # residual (x)
                pl.BlockSpec((tk, d_out), lambda i, k: (k, 0)),       # W_o chunk
                pl.BlockSpec((1, d_out), lambda i, k: (0, 0)),        # bias
            ],
            out_specs=pl.BlockSpec((tile_n, d_out), lambda i, k: (i, 0)),
            scratch_shapes=[pltpu.VMEM((tile_n, d_out), jnp.float32)]),
        compiler_params=_compiler_params(("parallel", "arbitrary"), vmem_limit),
    )(attn2d, res2d, w, bias)


# ---------------------------------------------------------------------------
# Kernel 4: LayerNorm2 + FFN (hidden-chunked) + second residual
# ---------------------------------------------------------------------------
def ln_ffn_kernel(x_ref, g_ref, b_ref, w1_ref, b1_ref, w2_ref, b2_ref, o_ref,
                  xn_ref, acc_ref, *, compute_dtype):
    j = pl.program_id(1)

    @pl.when(j == 0)
    def _():
        x = x_ref[...].astype(jnp.float32)
        xn_ref[...] = _layernorm_f32(x, g_ref[...], b_ref[...]).astype(xn_ref.dtype)
        acc_ref[...] = jnp.zeros_like(acc_ref)

    h = jnp.dot(xn_ref[...], w1_ref[...],
                preferred_element_type=jnp.float32) + b1_ref[...]       # (TN, TH) f32
    # Exact erf-based GELU (torch.nn.GELU default), kept in f32.
    h = 0.5 * h * (1.0 + lax.erf(h * (1.0 / math.sqrt(2.0))))
    acc_ref[...] += jnp.dot(h.astype(compute_dtype), w2_ref[...],
                            preferred_element_type=jnp.float32)

    @pl.when(j == pl.num_programs(1) - 1)
    def _():
        # FFN dropout is eval-mode identity.
        y = x_ref[...].astype(jnp.float32) + acc_ref[...] + b2_ref[...]
        o_ref[...] = y.astype(o_ref.dtype)


def ln_ffn_forward(x2d, gamma, beta, w1, b1, w2, b2, *, compute_dtype,
                   tile_n, tile_h, vmem_limit, out_dtype):
    n_pad, d = x2d.shape
    hdim = w1.shape[1]
    th = _pick_div_tile(hdim, tile_h)
    kernel = functools.partial(ln_ffn_kernel, compute_dtype=compute_dtype)
    return pl.pallas_call(
        kernel,
        out_shape=jax.ShapeDtypeStruct((n_pad, d), out_dtype),
        grid_spec=pltpu.PrefetchScalarGridSpec(
            num_scalar_prefetch=0,
            grid=(n_pad // tile_n, hdim // th),
            in_specs=[
                pl.BlockSpec((tile_n, d), lambda i, j: (i, 0)),
                pl.BlockSpec((1, d), lambda i, j: (0, 0)),
                pl.BlockSpec((1, d), lambda i, j: (0, 0)),
                pl.BlockSpec((d, th), lambda i, j: (0, j)),
                pl.BlockSpec((1, th), lambda i, j: (0, j)),
                pl.BlockSpec((th, d), lambda i, j: (j, 0)),
                pl.BlockSpec((1, d), lambda i, j: (0, 0)),
            ],
            out_specs=pl.BlockSpec((tile_n, d), lambda i, j: (i, 0)),
            scratch_shapes=[
                pltpu.VMEM((tile_n, d), compute_dtype),   # normalized activations
                pltpu.VMEM((tile_n, d), jnp.float32),     # f32 accumulator over H chunks
            ]),
        compiler_params=_compiler_params(("parallel", "arbitrary"), vmem_limit),
    )(x2d, gamma, beta, w1, b1, w2, b2)


# ---------------------------------------------------------------------------
# Block forward
# ---------------------------------------------------------------------------
def prepare_block_params(params, compute_dtype=jnp.bfloat16):
    """Cast matmul weights to the MXU compute dtype ONCE (avoids per-call casts / extra
    HBM traffic).  Biases and LayerNorm params stay f32 (added to f32 accumulators)."""
    out = dict(params)
    for name in ("w_q", "w_k", "w_v", "w_o", "w_ffn1", "w_ffn2"):
        out[name] = params[name].astype(compute_dtype)
    return out


def block_forward(x, params, *, compute_dtype=jnp.bfloat16,
                  tile_n=None, tile_k=None, tile_h=None, tile_q=None):
    """Block forward (eval mode): x = x + GQA(LN1(x)); out = x + FFN(LN2(x))."""
    b, s, d = x.shape
    n_heads = params["n_heads"]
    n_groups = params["n_groups"]
    dh = d // n_heads
    n = b * s

    hw = _hw_defaults()
    tile_n = hw["tile_n"] if tile_n is None else tile_n
    tile_k = hw["tile_k"] if tile_k is None else tile_k
    tile_h = hw["tile_h"] if tile_h is None else tile_h
    tile_q = hw["tile_q"] if tile_q is None else tile_q
    vmem_limit = hw["vmem_limit"]

    tile_n, n_pad = _pick_row_tile(n, tile_n)
    x2d = _pad_rows(x.reshape(n, d), n_pad)

    # Weights are expected to be pre-cast by prepare_block_params; this is a no-op then.
    cast = lambda w: w if w.dtype == compute_dtype else w.astype(compute_dtype)

    # --- LN1 + Q/K/V projections (q/k/v emitted directly in (B*S, feature) layout) ------
    q2d, k2d, v2d = ln_qkv_forward(
        x2d, params["ln1_g"], params["ln1_b"],
        cast(params["w_q"]), cast(params["w_k"]), cast(params["w_v"]),
        params["b_q"], params["b_k"], params["b_v"],
        compute_dtype=compute_dtype, tile_n=tile_n, tile_k=tile_k, vmem_limit=vmem_limit)

    # --- GQA attention, output already in (B*S, d) layout --------------------------------
    attn2d = attention_forward(q2d, k2d, v2d, batch=b, seq=s,
                               n_heads=n_heads, n_groups=n_groups, head_dim=dh,
                               compute_dtype=compute_dtype, tile_q=tile_q,
                               vmem_limit=vmem_limit)

    # --- W_o projection + first residual --------------------------------------------------
    x1 = proj_residual_forward(attn2d, x2d, cast(params["w_o"]), params["b_o"],
                               compute_dtype=compute_dtype, tile_n=tile_n,
                               tile_k=tile_k, vmem_limit=vmem_limit)

    # --- LN2 + FFN + second residual -------------------------------------------------------
    out = ln_ffn_forward(x1, params["ln2_g"], params["ln2_b"],
                         cast(params["w_ffn1"]), params["b_ffn1"],
                         cast(params["w_ffn2"]), params["b_ffn2"],
                         compute_dtype=compute_dtype, tile_n=tile_n, tile_h=tile_h,
                         vmem_limit=vmem_limit, out_dtype=x.dtype)
    return out[:n].reshape(b, s, d)


# ---------------------------------------------------------------------------
# Parameter init (mirrors nn.Linear / nn.LayerNorm defaults; weights stored (in, out))
# ---------------------------------------------------------------------------
def init_block_params(key, dims, n_heads, n_groups):
    dh = dims // n_heads
    hidden = dims * 4
    kv_dim = n_groups * dh
    keys = jax.random.split(key, 12)

    def linear(kw, kb, fan_in, fan_out):
        bound = 1.0 / math.sqrt(fan_in)
        w = jax.random.uniform(kw, (fan_in, fan_out), jnp.float32, -bound, bound)
        bias = jax.random.uniform(kb, (1, fan_out), jnp.float32, -bound, bound)
        return w, bias

    w_q, b_q = linear(keys[0], keys[1], dims, dims)
    w_k, b_k = linear(keys[2], keys[3], dims, kv_dim)
    w_v, b_v = linear(keys[4], keys[5], dims, kv_dim)
    w_o, b_o = linear(keys[6], keys[7], dims, dims)
    w_f1, b_f1 = linear(keys[8], keys[9], dims, hidden)
    w_f2, b_f2 = linear(keys[10], keys[11], hidden, dims)

    return dict(
        n_heads=n_heads, n_groups=n_groups,
        ln1_g=jnp.ones((1, dims), jnp.float32), ln1_b=jnp.zeros((1, dims), jnp.float32),
        ln2_g=jnp.ones((1, dims), jnp.float32), ln2_b=jnp.zeros((1, dims), jnp.float32),
        w_q=w_q, b_q=b_q, w_k=w_k, b_k=b_k, w_v=w_v, b_v=b_v,
        w_o=w_o, b_o=b_o,
        w_ffn1=w_f1, b_ffn1=b_f1, w_ffn2=w_f2, b_ffn2=b_f2,
    )


# ---------------------------------------------------------------------------
# Pure-JAX reference (same math, exact erf GELU, no mask — matches the module)
# ---------------------------------------------------------------------------
def block_reference(x, params):
    b, s, d = x.shape
    n_heads, n_groups = params["n_heads"], params["n_groups"]
    dh = d // n_heads
    gd = n_heads // n_groups

    def ln(v, g, bb):
        mu = v.mean(-1, keepdims=True)
        var = ((v - mu) ** 2).mean(-1, keepdims=True)
        return (v - mu) / jnp.sqrt(var + _LN_EPS) * g + bb

    h1 = ln(x, params["ln1_g"][0], params["ln1_b"][0]).reshape(-1, d)
    q = (h1 @ params["w_q"] + params["b_q"]).reshape(b, s, n_heads, dh).transpose(0, 2, 1, 3)
    k = (h1 @ params["w_k"] + params["b_k"]).reshape(b, s, n_groups, dh).transpose(0, 2, 1, 3)
    v = (h1 @ params["w_v"] + params["b_v"]).reshape(b, s, n_groups, dh).transpose(0, 2, 1, 3)
    k = jnp.repeat(k, gd, axis=1)
    v = jnp.repeat(v, gd, axis=1)
    scores = jnp.einsum("bhqd,bhkd->bhqk", q, k) / math.sqrt(dh)
    p = jax.nn.softmax(scores, axis=-1)
    o = jnp.einsum("bhqk,bhkd->bhqd", p, v).transpose(0, 2, 1, 3).reshape(b * s, d)
    x1 = x.reshape(-1, d) + o @ params["w_o"] + params["b_o"]
    h2 = ln(x1.reshape(b, s, d), params["ln2_g"][0], params["ln2_b"][0]).reshape(-1, d)
    hf = h2 @ params["w_ffn1"] + params["b_ffn1"]
    hf = 0.5 * hf * (1.0 + lax.erf(hf / math.sqrt(2.0)))
    out = x1 + hf @ params["w_ffn2"] + params["b_ffn2"]
    return out.reshape(b, s, d)


if __name__ == "__main__":
    # Small config consistent with the module: dims=32 (hidden=128), n_heads=4,
    # n_groups=2 (head_dims=8), batch=2, seq=8, dropout=0 (eval mode).
    B, S, dims, n_heads, n_groups = 2, 8, 32, 4, 2
    key = jax.random.PRNGKey(0)
    kx, kp = jax.random.split(key)
    x = jax.random.normal(kx, (B, S, dims), jnp.float32)
    params = init_block_params(kp, dims, n_heads, n_groups)

    ref = block_reference(x, params)

    # f32 compute path: strict check against the pure-JAX reference.
    p_f32 = prepare_block_params(params, jnp.float32)
    out_f32 = jax.block_until_ready(block_forward(x, p_f32, compute_dtype=jnp.float32))
    assert out_f32.shape == (B, S, dims)
    assert jnp.allclose(out_f32, ref, atol=5e-4, rtol=5e-4), "f32 mismatch vs reference"

    # bf16 MXU path (default, performance-oriented configuration): loose tolerance.
    p_bf16 = prepare_block_params(params, jnp.bfloat16)
    out_bf16 = jax.block_until_ready(block_forward(x, p_bf16))
    assert out_bf16.shape == (B, S, dims)
    assert jnp.allclose(out_bf16, ref, atol=1.5e-1, rtol=1.5e-1), "bf16 mismatch vs reference"

    print("KERNEL_OK")
</pallas_src>

<mosaic_0001>
module attributes {stable_mosaic.version = 11 : i64} {
  func.func @ln_qkv_kernel(%arg0: i32, %arg1: i32, %arg2: memref<16x32xf32, #tpu.memory_space<vmem>>, %arg3: memref<1x32xf32, #tpu.memory_space<vmem>>, %arg4: memref<1x32xf32, #tpu.memory_space<vmem>>, %arg5: memref<32x32xf32, #tpu.memory_space<vmem>>, %arg6: memref<32x16xf32, #tpu.memory_space<vmem>>, %arg7: memref<32x16xf32, #tpu.memory_space<vmem>>, %arg8: memref<1x32xf32, #tpu.memory_space<vmem>>, %arg9: memref<1x16xf32, #tpu.memory_space<vmem>>, %arg10: memref<1x16xf32, #tpu.memory_space<vmem>>, %arg11: memref<16x32xf32, #tpu.memory_space<vmem>>, %arg12: memref<16x16xf32, #tpu.memory_space<vmem>>, %arg13: memref<16x16xf32, #tpu.memory_space<vmem>>, %arg14: memref<16x32xf32, #tpu.memory_space<vmem>>, %arg15: memref<16x32xf32, #tpu.memory_space<vmem>>, %arg16: memref<16x16xf32, #tpu.memory_space<vmem>>, %arg17: memref<16x16xf32, #tpu.memory_space<vmem>>) attributes {dimension_semantics = [#tpu.dimension_semantics<parallel>, #tpu.dimension_semantics<arbitrary>], iteration_bounds = array<i64: 1, 1>, scalar_prefetch = 0 : i64, scratch_operands = 4 : i64, tpu.core_type = #tpu.core_type<tc>, window_params = [{transform_indices = @transform_0, window_bounds = array<i64: 16, 32>}, {pipeline_mode = #tpu.pipeline_mode<synchronous>, transform_indices = @transform_1, window_bounds = array<i64: 1, 32>}, {pipeline_mode = #tpu.pipeline_mode<synchronous>, transform_indices = @transform_2, window_bounds = array<i64: 1, 32>}, {transform_indices = @transform_3, window_bounds = array<i64: 32, 32>}, {transform_indices = @transform_4, window_bounds = array<i64: 32, 16>}, {transform_indices = @transform_5, window_bounds = array<i64: 32, 16>}, {pipeline_mode = #tpu.pipeline_mode<synchronous>, transform_indices = @transform_6, window_bounds = array<i64: 1, 32>}, {pipeline_mode = #tpu.pipeline_mode<synchronous>, transform_indices = @transform_7, window_bounds = array<i64: 1, 16>}, {pipeline_mode = #tpu.pipeline_mode<synchronous>, transform_indices = @transform_8, window_bounds = array<i64: 1, 16>}, {transform_indices = @transform_9, window_bounds = array<i64: 16, 32>}, {transform_indices = @transform_10, window_bounds = array<i64: 16, 16>}, {transform_indices = @transform_11, window_bounds = array<i64: 16, 16>}]} {
    %c0_i32 = arith.constant 0 : i32
    %0 = arith.cmpi eq, %arg1, %c0_i32 : i32
    %1 = arith.extui %0 : i1 to i32
    %c0_i32_0 = arith.constant 0 : i32
    %2 = arith.cmpi ne, %1, %c0_i32_0 : i32
    scf.if %2 {
      %c0_24 = arith.constant 0 : index
      %c0_25 = arith.constant 0 : index
      %22 = vector.load %arg2[%c0_24, %c0_25] : memref<16x32xf32, #tpu.memory_space<vmem>>, vector<16x32xf32>
      %c0_26 = arith.constant 0 : index
      %c0_27 = arith.constant 0 : index
      %23 = vector.load %arg3[%c0_26, %c0_27] : memref<1x32xf32, #tpu.memory_space<vmem>>, vector<1x32xf32>
      %c0_28 = arith.constant 0 : index
      %c0_29 = arith.constant 0 : index
      %24 = vector.load %arg4[%c0_28, %c0_29] : memref<1x32xf32, #tpu.memory_space<vmem>>, vector<1x32xf32>
      %cst_30 = arith.constant dense<0.000000e+00> : vector<16xf32>
      %25 = vector.multi_reduction <add>, %22, %cst_30 [1] : vector<16x32xf32> to vector<16xf32>
      %26 = vector.shape_cast %25 : vector<16xf32> to vector<16x1xf32>
      %cst_31 = arith.constant 3.200000e+01 : f32
      %27 = vector.broadcast %cst_31 : f32 to vector<16x1xf32>
      %28 = arith.divf %26, %27 : vector<16x1xf32>
      %29 = vector.broadcast %28 : vector<16x1xf32> to vector<16x32xf32>
      %30 = arith.subf %22, %29 : vector<16x32xf32>
      %31 = arith.mulf %30, %30 : vector<16x32xf32>
      %cst_32 = arith.constant dense<0.000000e+00> : vector<16xf32>
      %32 = vector.multi_reduction <add>, %31, %cst_32 [1] : vector<16x32xf32> to vector<16xf32>
      %33 = vector.shape_cast %32 : vector<16xf32> to vector<16x1xf32>
      %cst_33 = arith.constant 3.200000e+01 : f32
      %34 = vector.broadcast %cst_33 : f32 to vector<16x1xf32>
      %35 = arith.divf %33, %34 : vector<16x1xf32>
      %36 = vector.broadcast %28 : vector<16x1xf32> to vector<16x32xf32>
      %37 = arith.subf %22, %36 : vector<16x32xf32>
      %cst_34 = arith.constant 9.99999974E-6 : f32
      %38 = vector.broadcast %cst_34 : f32 to vector<16x1xf32>
      %39 = arith.addf %35, %38 : vector<16x1xf32>
      %40 = math.rsqrt %39 : vector<16x1xf32>
      %41 = vector.broadcast %40 : vector<16x1xf32> to vector<16x32xf32>
      %42 = arith.mulf %37, %41 : vector<16x32xf32>
      %43 = vector.broadcast %23 : vector<1x32xf32> to vector<16x32xf32>
      %44 = arith.mulf %42, %43 : vector<16x32xf32>
      %45 = vector.broadcast %24 : vector<1x32xf32> to vector<16x32xf32>
      %46 = arith.addf %44, %45 : vector<16x32xf32>
      %c0_35 = arith.constant 0 : index
      %c0_36 = arith.constant 0 : index
      %47 = vector.load %arg14[%c0_35, %c0_36] : memref<16x32xf32, #tpu.memory_space<vmem>>, vector<16x32xf32>
      tpu.vector_store %arg14[%c0_35, %c0_36], %46 {strides = array<i32>} : memref<16x32xf32, #tpu.memory_space<vmem>>, vector<16x32xf32>,
      %cst_37 = arith.constant 0.000000e+00 : f32
      %48 = vector.broadcast %cst_37 : f32 to vector<16x32xf32>
      %c0_38 = arith.constant 0 : index
      %c0_39 = arith.constant 0 : index
      %49 = vector.load %arg15[%c0_38, %c0_39] : memref<16x32xf32, #tpu.memory_space<vmem>>, vector<16x32xf32>
      tpu.vector_store %arg15[%c0_38, %c0_39], %48 {strides = array<i32>} : memref<16x32xf32, #tpu.memory_space<vmem>>, vector<16x32xf32>,
      %cst_40 = arith.constant 0.000000e+00 : f32
      %50 = vector.broadcast %cst_40 : f32 to vector<16x16xf32>
      %c0_41 = arith.constant 0 : index
      %c0_42 = arith.constant 0 : index
      %51 = vector.load %arg16[%c0_41, %c0_42] : memref<16x16xf32, #tpu.memory_space<vmem>>, vector<16x16xf32>
      tpu.vector_store %arg16[%c0_41, %c0_42], %50 {strides = array<i32>} : memref<16x16xf32, #tpu.memory_space<vmem>>, vector<16x16xf32>,
      %cst_43 = arith.constant 0.000000e+00 : f32
      %52 = vector.broadcast %cst_43 : f32 to vector<16x16xf32>
      %c0_44 = arith.constant 0 : index
      %c0_45 = arith.constant 0 : index
      %53 = vector.load %arg17[%c0_44, %c0_45] : memref<16x16xf32, #tpu.memory_space<vmem>>, vector<16x16xf32>
      tpu.vector_store %arg17[%c0_44, %c0_45], %52 {strides = array<i32>} : memref<16x16xf32, #tpu.memory_space<vmem>>, vector<16x16xf32>,
    } else {
    }
    %c0 = arith.constant 0 : index
    %c0_1 = arith.constant 0 : index
    %3 = vector.load %arg14[%c0, %c0_1] : memref<16x32xf32, #tpu.memory_space<vmem>>, vector<16x32xf32>
    %c0_2 = arith.constant 0 : index
    %c0_3 = arith.constant 0 : index
    %4 = vector.load %arg15[%c0_2, %c0_3] : memref<16x32xf32, #tpu.memory_space<vmem>>, vector<16x32xf32>
    %c0_4 = arith.constant 0 : index
    %c0_5 = arith.constant 0 : index
    %5 = vector.load %arg5[%c0_4, %c0_5] : memref<32x32xf32, #tpu.memory_space<vmem>>, vector<32x32xf32>
    %cst = arith.constant dense<0.000000e+00> : vector<16x32xf32>
    %6 = tpu.matmul %3, %5, %cst {dimension_numbers = #tpu.dot_dimension_numbers<[1], [0], [0], [1], [0, 0, 1, 1], [], []>} : vector<16x32xf32>, vector<32x32xf32>, vector<16x32xf32> -> vector<16x32xf32>
    %7 = arith.addf %4, %6 : vector<16x32xf32>
    %c0_6 = arith.constant 0 : index
    %c0_7 = arith.constant 0 : index
    %8 = vector.load %arg15[%c0_6, %c0_7] : memref<16x32xf32, #tpu.memory_space<vmem>>, vector<16x32xf32>
    tpu.vector_store %arg15[%c0_6, %c0_7], %7 {strides = array<i32>} : memref<16x32xf32, #tpu.memory_space<vmem>>, vector<16x32xf32>,
    %c0_8 = arith.constant 0 : index
    %c0_9 = arith.constant 0 : index
    %9 = vector.load %arg16[%c0_8, %c0_9] : memref<16x16xf32, #tpu.memory_space<vmem>>, vector<16x16xf32>
    %c0_10 = arith.constant 0 : index
    %c0_11 = arith.constant 0 : index
    %10 = vector.load %arg6[%c0_10, %c0_11] : memref<32x16xf32, #tpu.memory_space<vmem>>, vector<32x16xf32>
    %cst_12 = arith.constant dense<0.000000e+00> : vector<16x16xf32>
    %11 = tpu.matmul %3, %10, %cst_12 {dimension_numbers = #tpu.dot_dimension_numbers<[1], [0], [0], [1], [0, 0, 1, 1], [], []>} : vector<16x32xf32>, vector<32x16xf32>, vector<16x16xf32> -> vector<16x16xf32>
    %12 = arith.addf %9, %11 : vector<16x16xf32>
    %c0_13 = arith.constant 0 : index
    %c0_14 = arith.constant 0 : index
    %13 = vector.load %arg16[%c0_13, %c0_14] : memref<16x16xf32, #tpu.memory_space<vmem>>, vector<16x16xf32>
    tpu.vector_store %arg16[%c0_13, %c0_14], %12 {strides = array<i32>} : memref<16x16xf32, #tpu.memory_space<vmem>>, vector<16x16xf32>,
    %c0_15 = arith.constant 0 : index
    %c0_16 = arith.constant 0 : index
    %14 = vector.load %arg17[%c0_15, %c0_16] : memref<16x16xf32, #tpu.memory_space<vmem>>, vector<16x16xf32>
    %c0_17 = arith.constant 0 : index
    %c0_18 = arith.constant 0 : index
    %15 = vector.load %arg7[%c0_17, %c0_18] : memref<32x16xf32, #tpu.memory_space<vmem>>, vector<32x16xf32>
    %cst_19 = arith.constant dense<0.000000e+00> : vector<16x16xf32>
    %16 = tpu.matmul %3, %15, %cst_19 {dimension_numbers = #tpu.dot_dimension_numbers<[1], [0], [0], [1], [0, 0, 1, 1], [], []>} : vector<16x32xf32>, vector<32x16xf32>, vector<16x16xf32> -> vector<16x16xf32>
    %17 = arith.addf %14, %16 : vector<16x16xf32>
    %c0_20 = arith.constant 0 : index
    %c0_21 = arith.constant 0 : index
    %18 = vector.load %arg17[%c0_20, %c0_21] : memref<16x16xf32, #tpu.memory_space<vmem>>, vector<16x16xf32>
    tpu.vector_store %arg17[%c0_20, %c0_21], %17 {strides = array<i32>} : memref<16x16xf32, #tpu.memory_space<vmem>>, vector<16x16xf32>,
    %c0_i32_22 = arith.constant 0 : i32
    %19 = arith.cmpi eq, %arg1, %c0_i32_22 : i32
    %20 = arith.extui %19 : i1 to i32
    %c0_i32_23 = arith.constant 0 : i32
    %21 = arith.cmpi ne, %20, %c0_i32_23 : i32
    scf.if %21 {
      %c0_24 = arith.constant 0 : index
      %c0_25 = arith.constant 0 : index
      %22 = vector.load %arg15[%c0_24, %c0_25] : memref<16x32xf32, #tpu.memory_space<vmem>>, vector<16x32xf32>
      %c0_26 = arith.constant 0 : index
      %c0_27 = arith.constant 0 : index
      %23 = vector.load %arg8[%c0_26, %c0_27] : memref<1x32xf32, #tpu.memory_space<vmem>>, vector<1x32xf32>
      %24 = vector.broadcast %23 : vector<1x32xf32> to vector<16x32xf32>
      %25 = arith.addf %22, %24 : vector<16x32xf32>
      %c0_28 = arith.constant 0 : index
      %c0_29 = arith.constant 0 : index
      %26 = vector.load %arg11[%c0_28, %c0_29] : memref<16x32xf32, #tpu.memory_space<vmem>>, vector<16x32xf32>
      tpu.vector_store %arg11[%c0_28, %c0_29], %25 {strides = array<i32>} : memref<16x32xf32, #tpu.memory_space<vmem>>, vector<16x32xf32>,
      %c0_30 = arith.constant 0 : index
      %c0_31 = arith.constant 0 : index
      %27 = vector.load %arg16[%c0_30, %c0_31] : memref<16x16xf32, #tpu.memory_space<vmem>>, vector<16x16xf32>
      %c0_32 = arith.constant 0 : index
      %c0_33 = arith.constant 0 : index
      %28 = vector.load %arg9[%c0_32, %c0_33] : memref<1x16xf32, #tpu.memory_space<vmem>>, vector<1x16xf32>
      %29 = vector.broadcast %28 : vector<1x16xf32> to vector<16x16xf32>
      %30 = arith.addf %27, %29 : vector<16x16xf32>
      %c0_34 = arith.constant 0 : index
      %c0_35 = arith.constant 0 : index
      %31 = vector.load %arg12[%c0_34, %c0_35] : memref<16x16xf32, #tpu.memory_space<vmem>>, vector<16x16xf32>
      tpu.vector_store %arg12[%c0_34, %c0_35], %30 {strides = array<i32>} : memref<16x16xf32, #tpu.memory_space<vmem>>, vector<16x16xf32>,
      %c0_36 = arith.constant 0 : index
      %c0_37 = arith.constant 0 : index
      %32 = vector.load %arg17[%c0_36, %c0_37] : memref<16x16xf32, #tpu.memory_space<vmem>>, vector<16x16xf32>
      %c0_38 = arith.constant 0 : index
      %c0_39 = arith.constant 0 : index
      %33 = vector.load %arg10[%c0_38, %c0_39] : memref<1x16xf32, #tpu.memory_space<vmem>>, vector<1x16xf32>
      %34 = vector.broadcast %33 : vector<1x16xf32> to vector<16x16xf32>
      %35 = arith.addf %32, %34 : vector<16x16xf32>
      %c0_40 = arith.constant 0 : index
      %c0_41 = arith.constant 0 : index
      %36 = vector.load %arg13[%c0_40, %c0_41] : memref<16x16xf32, #tpu.memory_space<vmem>>, vector<16x16xf32>
      tpu.vector_store %arg13[%c0_40, %c0_41], %35 {strides = array<i32>} : memref<16x16xf32, #tpu.memory_space<vmem>>, vector<16x16xf32>,
    } else {
    }
    return
  }
  func.func @transform_0(%arg0: i32, %arg1: i32) -> (i32, i32) {
    %c0_i32 = arith.constant 0 : i32
    %c0_i32_0 = arith.constant 0 : i32
    return %arg0, %c0_i32 : i32, i32
  }
  func.func @transform_1(%arg0: i32, %arg1: i32) -> (i32, i32) {
    %c0_i32 = arith.constant 0 : i32
    %c0_i32_0 = arith.constant 0 : i32
    %c0_i32_1 = arith.constant 0 : i32
    return %c0_i32, %c0_i32_0 : i32, i32
  }
  func.func @transform_2(%arg0: i32, %arg1: i32) -> (i32, i32) {
    %c0_i32 = arith.constant 0 : i32
    %c0_i32_0 = arith.constant 0 : i32
    %c0_i32_1 = arith.constant 0 : i32
    return %c0_i32, %c0_i32_0 : i32, i32
  }
  func.func @transform_3(%arg0: i32, %arg1: i32) -> (i32, i32) {
    %c0_i32 = arith.constant 0 : i32
    %c0_i32_0 = arith.constant 0 : i32
    return %arg1, %c0_i32 : i32, i32
  }
  func.func @transform_4(%arg0: i32, %arg1: i32) -> (i32, i32) {
    %c0_i32 = arith.constant 0 : i32
    %c0_i32_0 = arith.constant 0 : i32
    return %arg1, %c0_i32 : i32, i32
  }
  func.func @transform_5(%arg0: i32, %arg1: i32) -> (i32, i32) {
    %c0_i32 = arith.constant 0 : i32
    %c0_i32_0 = arith.constant 0 : i32
    return %arg1, %c0_i32 : i32, i32
  }
  func.func @transform_6(%arg0: i32, %arg1: i32) -> (i32, i32) {
    %c0_i32 = arith.constant 0 : i32
    %c0_i32_0 = arith.constant 0 : i32
    %c0_i32_1 = arith.constant 0 : i32
    return %c0_i32, %c0_i32_0 : i32, i32
  }
  func.func @transform_7(%arg0: i32, %arg1: i32) -> (i32, i32) {
    %c0_i32 = arith.constant 0 : i32
    %c0_i32_0 = arith.constant 0 : i32
    %c0_i32_1 = arith.constant 0 : i32
    return %c0_i32, %c0_i32_0 : i32, i32
  }
  func.func @transform_8(%arg0: i32, %arg1: i32) -> (i32, i32) {
    %c0_i32 = arith.constant 0 : i32
    %c0_i32_0 = arith.constant 0 : i32
    %c0_i32_1 = arith.constant 0 : i32
    return %c0_i32, %c0_i32_0 : i32, i32
  }
  func.func @transform_9(%arg0: i32, %arg1: i32) -> (i32, i32) {
    %c0_i32 = arith.constant 0 : i32
    %c0_i32_0 = arith.constant 0 : i32
    return %arg0, %c0_i32 : i32, i32
  }
  func.func @transform_10(%arg0: i32, %arg1: i32) -> (i32, i32) {
    %c0_i32 = arith.constant 0 : i32
    %c0_i32_0 = arith.constant 0 : i32
    return %arg0, %c0_i32 : i32, i32
  }
  func.func @transform_11(%arg0: i32, %arg1: i32) -> (i32, i32) {
    %c0_i32 = arith.constant 0 : i32
    %c0_i32_0 = arith.constant 0 : i32
    return %arg0, %c0_i32 : i32, i32
  }
}

</mosaic_0001>

<llo_original>
// kernel: tpu_custom_call.1
$region0: #{tpu_custom_call.1}
  #allocation0 [shape = 'u32[]', space=smem, size = 0x4, offset = 0x4, fixed_abs, tag = 'smem constant byte address 0x4 - core index']
  #allocation1 [shape = 'u32[144,128]{1,0:T(1,128)}', space=vmem, size = 0x12000, scoped, tag = 'internal scratch']
  #allocation2 [shape = 'f32[16,32]{1,0:T(8,128)}', space=vmem, size = 0x2000, scoped, tag = 'scratch operand']
  #allocation3 [shape = 'f32[16,32]{1,0:T(8,128)}', space=vmem, size = 0x2000, scoped, tag = 'scratch operand']
  #allocation4 [shape = 'f32[16,16]{1,0:T(8,128)}', space=vmem, size = 0x2000, scoped, tag = 'scratch operand']
  #allocation5 [shape = 'f32[16,16]{1,0:T(8,128)}', space=vmem, size = 0x2000, scoped, tag = 'scratch operand']
  %s0 = inlined_call_operand.vmem [shape: f32[16,32], index: 0, kind: input, shape index: {}]
  %s1 = inlined_call_operand.vmem [shape: f32[1,32], index: 1, kind: input, shape index: {}]
  %s2 = inlined_call_operand.vmem [shape: f32[1,32], index: 2, kind: input, shape index: {}]
  %s3 = inlined_call_operand.vmem [shape: f32[32,32], index: 3, kind: input, shape index: {}]
  %s4 = inlined_call_operand.vmem [shape: f32[32,16], index: 4, kind: input, shape index: {}]
  %s5 = inlined_call_operand.vmem [shape: f32[32,16], index: 5, kind: input, shape index: {}]
  %s6 = inlined_call_operand.vmem [shape: f32[1,32], index: 6, kind: input, shape index: {}]
  %s7 = inlined_call_operand.vmem [shape: f32[1,16], index: 7, kind: input, shape index: {}]
  %s8 = inlined_call_operand.vmem [shape: f32[1,16], index: 8, kind: input, shape index: {}]
  %s9 = inlined_call_operand.hbm [shape: f32[16,32], index: 9, kind: output, shape index: {0}]
  %s10 = inlined_call_operand.hbm [shape: f32[16,16], index: 10, kind: output, shape index: {1}]
  %s11 = inlined_call_operand.hbm [shape: f32[16,16], index: 11, kind: output, shape index: {2}]
  %12 = xla_tuple %s9, %s10, %s11
  %s13 = sld [smem:[#allocation0]]
  $region70: #{tpu_custom_call.1} parent=0
    _
  %s15 = ssub.s32 1, %s13
  %s16 = scalar_select 0, %s15, %s13
  $region1: #{tpu_custom_call.1} parent=0
    #allocation6 [shape = 'u8[8192]{0}', space=vmem, size = 0x2000, scoped, tag = 'output window, operand 0, single buffered']
    #allocation7 [shape = 's32[1]{0}', space=sflag, size = 0x4, scoped, tag = 'scoped memory for tpu_custom_call.1']
    #allocation8 [shape = 'u8[8192]{0}', space=vmem, size = 0x2000, scoped, tag = 'output window, operand 1, single buffered']
    #allocation9 [shape = 's32[1]{0}', space=sflag, size = 0x4, scoped, tag = 'scoped memory for tpu_custom_call.1']
    #allocation10 [shape = 'u8[8192]{0}', space=vmem, size = 0x2000, scoped, tag = 'output window, operand 2, single buffered']
    %17 = vsyncpa [#allocation7], 0
    %18 = vsyncpa [#allocation9], 0
    // Predicated region
    $region2: #{tpu_custom_call.1} parent=1 // pred_check
      _
    $region3: #{tpu_custom_call.1} parent=1 // pred_check_branch
      %20 = sbr.rel (0) target = $region5
    $region4: #{tpu_custom_call.1} parent=1 // pred_region
      _
    $region5: #{tpu_custom_call.1} parent=1 // pred_fallthru
      _
    // Predicated region
    $region6: #{tpu_custom_call.1} parent=1 // pred_check
      _
    $region7: #{tpu_custom_call.1} parent=1 // pred_check_branch
      %22 = sbr.rel (0) target = $region9
    $region8: #{tpu_custom_call.1} parent=1 // pred_region
      _
    $region9: #{tpu_custom_call.1} parent=1 // pred_fallthru
      _
    // Predicated region
    $region10: #{tpu_custom_call.1} parent=1 // pred_check
      _
    $region11: #{tpu_custom_call.1} parent=1 // pred_check_branch
      %24 = sbr.rel (0) target = $region13
    $region12: #{tpu_custom_call.1} parent=1 // pred_region
      _
    $region13: #{tpu_custom_call.1} parent=1 // pred_fallthru
      _
    // Predicated region
    $region14: #{tpu_custom_call.1} parent=1 // pred_check
      _
    $region15: #{tpu_custom_call.1} parent=1 // pred_check_branch
      %26 = sbr.rel (0) target = $region17
    $region16: #{tpu_custom_call.1} parent=1 // pred_region
      _
    $region17: #{tpu_custom_call.1} parent=1 // pred_fallthru
      _
    // Predicated region
    $region18: #{tpu_custom_call.1} parent=1 // pred_check
      _
    $region19: #{tpu_custom_call.1} parent=1 // pred_check_branch
      %28 = sbr.rel (0) target = $region21
    $region20: #{tpu_custom_call.1} parent=1 // pred_region
      _
    $region21: #{tpu_custom_call.1} parent=1 // pred_fallthru
      _
    // Predicated region
    $region22: #{tpu_custom_call.1} parent=1 // pred_check
      _
    $region23: #{tpu_custom_call.1} parent=1 // pred_check_branch
      %30 = sbr.rel (0) target = $region25
    $region24: #{tpu_custom_call.1} parent=1 // pred_region
      _
    $region25: #{tpu_custom_call.1} parent=1 // pred_fallthru
      _
    // Predicated region
    $region26: #{tpu_custom_call.1} parent=1 // pred_check
      _
    $region27: #{tpu_custom_call.1} parent=1 // pred_check_branch
      %32 = sbr.rel (0) target = $region29
    $region28: #{tpu_custom_call.1} parent=1 // pred_region
      _
    $region29: #{tpu_custom_call.1} parent=1 // pred_fallthru
      _
    // Predicated region
    $region30: #{tpu_custom_call.1} parent=1 // pred_check
      _
    $region31: #{tpu_custom_call.1} parent=1 // pred_check_branch
      %34 = sbr.rel (0) target = $region33
    $region32: #{tpu_custom_call.1} parent=1 // pred_region
      _
    $region33: #{tpu_custom_call.1} parent=1 // pred_fallthru
      _
    // Predicated region
    $region34: #{tpu_custom_call.1} parent=1 // pred_check
      _
    $region35: #{tpu_custom_call.1} parent=1 // pred_check_branch
      %36 = sbr.rel (0) target = $region37
    $region36: #{tpu_custom_call.1} parent=1 // pred_region
      _
    $region37: #{tpu_custom_call.1} parent=1 // pred_fallthru
      _
    %p37 = scmp.eq.s32.totalorder 0, 0
    // Predicated region
    $region38: #{tpu_custom_call.1} parent=1 // pred_check
      %p38 = pneg %p37
    $region39: #{tpu_custom_call.1} parent=1 // pred_check_branch
      %40 = sbr.rel (%p38) target = $region41
    $region40: #{tpu_custom_call.1} parent=1 // pred_region
      %v41 = vld [vmem:[%s0] sm:$0xff]
      %v42 = vld [vmem:[%s0 + $0x8] sm:$0xff]
      %v43 = vld [vmem:[%s1] sm:$0x1]
      %v44 = vld [vmem:[%s2] sm:$0x1]
      %vm45 = vcmask 261120
      %v46 = vsel %vm45, %v41, 0.0
      %47 = vadd.xlane.f32.xlu0 %v46
      %v48 = vpop.xlane.xlu0 %47
      %v49 = vsel %vm45, %v42, 0.0
      %50 = vadd.xlane.f32.xlu0 %v49
      %v51 = vpop.xlane.xlu0 %50
      %v52 = vrcp.pop 32.0
      %v53 = vmul.f32 %v48, %v52
      %v54 = vmul.f32 %v51, %v52
      %v55 = vsub.f32 %v41, %v53
      %v56 = vsub.f32 %v42, %v54
      %v57 = vmul.f32 %v55, %v55
      %v58 = vmul.f32 %v56, %v56
      %v59 = vsel %vm45, %v57, 0.0
      %60 = vadd.xlane.f32.xlu0 %v59
      %v61 = vpop.xlane.xlu0 %60
      %v62 = vsel %vm45, %v58, 0.0
      %63 = vadd.xlane.f32.xlu0 %v62
      %v64 = vpop.xlane.xlu0 %63
      %v65 = vmul.f32 %v61, %v52
      %v66 = vmul.f32 %v64, %v52
      %v67 = vadd.f32 %v65, 1e-05
      %v68 = vadd.f32 %v66, 1e-05
      %v69 = vrsqrt.pop %v67
      %v70 = vrsqrt.pop %v68
      %v71 = vmul.f32 %v55, %v69
      %v72 = vmul.f32 %v56, %v70
      %v74 = vlaneseq
      %v75 = vshrl.u32 %v74, 7
      %v76 = vsub.s32 0, %v75
      %v77 = vrot.slane %v43, %v76
      %v79 = vmul.f32 %v71, %v77
      %v80 = vmul.f32 %v72, %v77
      %v82 = vlaneseq
      %v83 = vshrl.u32 %v82, 7
      %v84 = vsub.s32 0, %v83
      %v85 = vrot.slane %v44, %v84
      %v87 = vadd.f32 %v79, %v85
      %v88 = vadd.f32 %v80, %v85
      %89 = vst.msk [vmem:[#allocation2] sm:$0xff] %vm45, %v87
      %90 = vst.msk [vmem:[#allocation2 + $0x8] sm:$0xff] %vm45, %v88
      %91 = vst.msk [vmem:[#allocation3] sm:$0xff] %vm45, 0.0
      %92 = vst.msk [vmem:[#allocation3 + $0x8] sm:$0xff] %vm45, 0.0
      %vm93 = vcmask 130048
      %94 = vst.msk [vmem:[#allocation4] sm:$0xff] %vm93, 0.0
      %95 = vst.msk [vmem:[#allocation4 + $0x8] sm:$0xff] %vm93, 0.0
      %96 = vst.msk [vmem:[#allocation5] sm:$0xff] %vm93, 0.0
      %97 = vst.msk [vmem:[#allocation5 + $0x8] sm:$0xff] %vm93, 0.0
    $region41: #{tpu_custom_call.1} parent=1 // pred_fallthru
      _
    %v98 = vld [vmem:[#allocation2] sm:$0xff]
    %v99 = vld [vmem:[#allocation2 + $0x8] sm:$0xff]
    %v100 = vld [vmem:[#allocation3] sm:$0xff]
    %v101 = vld [vmem:[#allocation3 + $0x8] sm:$0xff]
    %v102 = vld [vmem:[%s3] sm:$0xff]
    %v103 = vld [vmem:[%s3 + $0x8] sm:$0xff]
    %v104 = vld [vmem:[%s3 + $0x10] sm:$0xff]
    %v105 = vld [vmem:[%s3 + $0x18] sm:$0xff]
    %vm106 = vcmask 261120
    %v108 = vsel %vm106, %v98, 0
    %v111 = vsel %vm106, %v99, 0
    %113 = vmatprep.subr.mxu0 0.0
    %114 = vmatpush1.msra.mxu0 %v102
    %115 = vmatprep.subr.mxu0 0.0
    %116 = vmatpush1.msra.mxu0 %v103
    %117 = vmatprep.subr.mxu0 0.0
    %118 = vmatpush1.msra.mxu0 %v104
    %119 = vmatprep.subr.mxu0 0.0
    %120 = vmatpush1.msra.mxu0 %v105
    %121 = vmatprep.subr.mxu0 0.0
    %122 = vmatpush1.msra.mxu0 0.0
    %123 = vmatprep.subr.mxu0 0.0
    %124 = vmatpush1.msra.mxu0 0.0
    %125 = vmatprep.subr.mxu0 0.0
    %126 = vmatpush1.msra.mxu0 0.0
    %127 = vmatprep.subr.mxu0 0.0
    %128 = vmatpush1.msra.mxu0 0.0
    %129 = vmatprep.subr.mxu0 0.0
    %130 = vmatpush1.msra.mxu0 0.0
    %131 = vmatprep.subr.mxu0 0.0
    %132 = vmatpush1.msra.mxu0 0.0
    %133 = vmatprep.subr.mxu0 0.0
    %134 = vmatpush1.msra.mxu0 0.0
    %135 = vmatprep.subr.mxu0 0.0
    %136 = vmatpush1.msra.mxu0 0.0
    %137 = vmatprep.subr.mxu0 0.0
    %138 = vmatpush1.msra.mxu0 0.0
    %139 = vmatprep.subr.mxu0 0.0
    %140 = vmatpush1.msra.mxu0 0.0
    %141 = vmatprep.subr.mxu0 0.0
    %142 = vmatpush1.msra.mxu0 0.0
    %143 = vmatprep.subr.mxu0 0.0
    %144 = vmatpush1.msra.mxu0 0.0
    %145 = vmatprep.subr.mxu0 0.0
    %146 = vmatpush1.msra.mxu0 0.0
    %147 = vmatprep.subr.mxu0 0.0
    %148 = vmatpush1.msra.mxu0 0.0
    %149 = vmatprep.subr.mxu0 0.0
    %150 = vmatpush1.msra.mxu0 0.0
    %151 = vmatprep.subr.mxu0 0.0
    %152 = vmatpush1.msra.mxu0 0.0
    %153 = vmatprep.subr.mxu0 0.0
    %154 = vmatpush1.msra.mxu0 0.0
    %155 = vmatprep.subr.mxu0 0.0
    %156 = vmatpush1.msra.mxu0 0.0
    %157 = vmatprep.subr.mxu0 0.0
    %158 = vmatpush1.msra.mxu0 0.0
    %159 = vmatprep.subr.mxu0 0.0
    %160 = vmatpush1.msra.mxu0 0.0
    %161 = vmatprep.subr.mxu0 0.0
    %162 = vmatpush1.msra.mxu0 0.0
    %163 = vmatprep.subr.mxu0 0.0
    %164 = vmatpush1.msra.mxu0 0.0
    %165 = vmatprep.subr.mxu0 0.0
    %166 = vmatpush1.msra.mxu0 0.0
    %167 = vmatprep.subr.mxu0 0.0
    %168 = vmatpush1.msra.mxu0 0.0
    %169 = vmatprep.subr.mxu0 0.0
    %170 = vmatpush1.msra.mxu0 0.0
    %171 = vmatprep.subr.mxu0 0.0
    %172 = vmatpush1.msra.mxu0 0.0
    %173 = vmatprep.subr.mxu0 0.0
    %174 = vmatpush1.msra.mxu0 0.0
    %175 = vmatprep.subr.mxu0 0.0
    %176 = vmatpush1.msra.mxu0 0.0
    %177 = vmatprep.mubr.f32.mxu0 0.0
    %178 = vmatmul.mubr.f32.gmra.mrb[0].mxu0 %v108
    %v179 = vpop.f32.mrb[0].mxu0
    %v180 = vadd.f32 0.0, %v179
    %v181 = vpop.f32.mrb[0].mxu0
    %182 = vmatprep.mubr.f32.mxu0 0.0
    %183 = vmatmul.mubr.f32.gmra.mrb[0].mxu0 %v111
    %v184 = vpop.f32.mrb[0].mxu0
    %v185 = vadd.f32 0.0, %v184
    %v186 = vpop.f32.mrb[0].mxu0
    %187 = vdwg.mxu0
    %v188 = vadd.f32 %v100, %v180
    %v189 = vadd.f32 %v101, %v185
    %190 = vst.msk [vmem:[#allocation3] sm:$0xff] %vm106, %v188
    %191 = vst.msk [vmem:[#allocation3 + $0x8] sm:$0xff] %vm106, %v189
    %v192 = vld [vmem:[#allocation4] sm:$0xff]
    %v193 = vld [vmem:[#allocation4 + $0x8] sm:$0xff]
    %v194 = vld [vmem:[%s4] sm:$0xff]
    %v195 = vld [vmem:[%s4 + $0x8] sm:$0xff]
    %v196 = vld [vmem:[%s4 + $0x10] sm:$0xff]
    %v197 = vld [vmem:[%s4 + $0x18] sm:$0xff]
    %198 = vmatprep.subr.mxu0 0.0
    %199 = vmatpush1.msra.mxu0 %v194
    %200 = vmatprep.subr.mxu0 0.0
    %201 = vmatpush1.msra.mxu0 %v195
    %202 = vmatprep.subr.mxu0 0.0
    %203 = vmatpush1.msra.mxu0 %v196
    %204 = vmatprep.subr.mxu0 0.0
    %205 = vmatpush1.msra.mxu0 %v197
    %206 = vmatprep.subr.mxu0 0.0
    %207 = vmatpush1.msra.mxu0 0.0
    %208 = vmatprep.subr.mxu0 0.0
    %209 = vmatpush1.msra.mxu0 0.0
    %210 = vmatprep.subr.mxu0 0.0
    %211 = vmatpush1.msra.mxu0 0.0
    %212 = vmatprep.subr.mxu0 0.0
    %213 = vmatpush1.msra.mxu0 0.0
    %214 = vmatprep.subr.mxu0 0.0
    %215 = vmatpush1.msra.mxu0 0.0
    %216 = vmatprep.subr.mxu0 0.0
    %217 = vmatpush1.msra.mxu0 0.0
    %218 = vmatprep.subr.mxu0 0.0
    %219 = vmatpush1.msra.mxu0 0.0
    %220 = vmatprep.subr.mxu0 0.0
    %221 = vmatpush1.msra.mxu0 0.0
    %222 = vmatprep.subr.mxu0 0.0
    %223 = vmatpush1.msra.mxu0 0.0
    %224 = vmatprep.subr.mxu0 0.0
    %225 = vmatpush1.msra.mxu0 0.0
    %226 = vmatprep.subr.mxu0 0.0
    %227 = vmatpush1.msra.mxu0 0.0
    %228 = vmatprep.subr.mxu0 0.0
    %229 = vmatpush1.msra.mxu0 0.0
    %230 = vmatprep.subr.mxu0 0.0
    %231 = vmatpush1.msra.mxu0 0.0
    %232 = vmatprep.subr.mxu0 0.0
    %233 = vmatpush1.msra.mxu0 0.0
    %234 = vmatprep.subr.mxu0 0.0
    %235 = vmatpush1.msra.mxu0 0.0
    %236 = vmatprep.subr.mxu0 0.0
    %237 = vmatpush1.msra.mxu0 0.0
    %238 = vmatprep.subr.mxu0 0.0
    %239 = vmatpush1.msra.mxu0 0.0
    %240 = vmatprep.subr.mxu0 0.0
    %241 = vmatpush1.msra.mxu0 0.0
    %242 = vmatprep.subr.mxu0 0.0
    %243 = vmatpush1.msra.mxu0 0.0
    %244 = vmatprep.subr.mxu0 0.0
    %245 = vmatpush1.msra.mxu0 0.0
    %246 = vmatprep.subr.mxu0 0.0
    %247 = vmatpush1.msra.mxu0 0.0
    %248 = vmatprep.subr.mxu0 0.0
    %249 = vmatpush1.msra.mxu0 0.0
    %250 = vmatprep.subr.mxu0 0.0
    %251 = vmatpush1.msra.mxu0 0.0
    %252 = vmatprep.subr.mxu0 0.0
    %253 = vmatpush1.msra.mxu0 0.0
    %254 = vmatprep.subr.mxu0 0.0
    %255 = vmatpush1.msra.mxu0 0.0
    %256 = vmatprep.subr.mxu0 0.0
    %257 = vmatpush1.msra.mxu0 0.0
    %258 = vmatprep.subr.mxu0 0.0
    %259 = vmatpush1.msra.mxu0 0.0
    %260 = vmatprep.subr.mxu0 0.0
    %261 = vmatpush1.msra.mxu0 0.0
    %262 = vmatprep.mubr.f32.mxu0 0.0
    %263 = vmatmul.mubr.f32.gmra.mrb[0].mxu0 %v108
    %v264 = vpop.f32.mrb[0].mxu0
    %v265 = vadd.f32 0.0, %v264
    %v266 = vpop.f32.mrb[0].mxu0
    %267 = vmatprep.mubr.f32.mxu0 0.0
    %268 = vmatmul.mubr.f32.gmra.mrb[0].mxu0 %v111
    %v269 = vpop.f32.mrb[0].mxu0
    %v270 = vadd.f32 0.0, %v269
    %v271 = vpop.f32.mrb[0].mxu0
    %272 = vdwg.mxu0
    %v273 = vadd.f32 %v192, %v265
    %v274 = vadd.f32 %v193, %v270
    %vm275 = vcmask 130048
    %276 = vst.msk [vmem:[#allocation4] sm:$0xff] %vm275, %v273
    %277 = vst.msk [vmem:[#allocation4 + $0x8] sm:$0xff] %vm275, %v274
    %v278 = vld [vmem:[#allocation5] sm:$0xff]
    %v279 = vld [vmem:[#allocation5 + $0x8] sm:$0xff]
    %v280 = vld [vmem:[%s5] sm:$0xff]
    %v281 = vld [vmem:[%s5 + $0x8] sm:$0xff]
    %v282 = vld [vmem:[%s5 + $0x10] sm:$0xff]
    %v283 = vld [vmem:[%s5 + $0x18] sm:$0xff]
    %284 = vmatprep.subr.mxu0 0.0
    %285 = vmatpush1.msra.mxu0 %v280
    %286 = vmatprep.subr.mxu0 0.0
    %287 = vmatpush1.msra.mxu0 %v281
    %288 = vmatprep.subr.mxu0 0.0
    %289 = vmatpush1.msra.mxu0 %v282
    %290 = vmatprep.subr.mxu0 0.0
    %291 = vmatpush1.msra.mxu0 %v283
    %292 = vmatprep.subr.mxu0 0.0
    %293 = vmatpush1.msra.mxu0 0.0
    %294 = vmatprep.subr.mxu0 0.0
    %295 = vmatpush1.msra.mxu0 0.0
    %296 = vmatprep.subr.mxu0 0.0
    %297 = vmatpush1.msra.mxu0 0.0
    %298 = vmatprep.subr.mxu0 0.0
    %299 = vmatpush1.msra.mxu0 0.0
    %300 = vmatprep.subr.mxu0 0.0
    %301 = vmatpush1.msra.mxu0 0.0
    %302 = vmatprep.subr.mxu0 0.0
    %303 = vmatpush1.msra.mxu0 0.0
    %304 = vmatprep.subr.mxu0 0.0
    %305 = vmatpush1.msra.mxu0 0.0
    %306 = vmatprep.subr.mxu0 0.0
    %307 = vmatpush1.msra.mxu0 0.0
    %308 = vmatprep.subr.mxu0 0.0
    %309 = vmatpush1.msra.mxu0 0.0
    %310 = vmatprep.subr.mxu0 0.0
    %311 = vmatpush1.msra.mxu0 0.0
    %312 = vmatprep.subr.mxu0 0.0
    %313 = vmatpush1.msra.mxu0 0.0
    %314 = vmatprep.subr.mxu0 0.0
    %315 = vmatpush1.msra.mxu0 0.0
    %316 = vmatprep.subr.mxu0 0.0
    %317 = vmatpush1.msra.mxu0 0.0
    %318 = vmatprep.subr.mxu0 0.0
    %319 = vmatpush1.msra.mxu0 0.0
    %320 = vmatprep.subr.mxu0 0.0
    %321 = vmatpush1.msra.mxu0 0.0
    %322 = vmatprep.subr.mxu0 0.0
    %323 = vmatpush1.msra.mxu0 0.0
    %324 = vmatprep.subr.mxu0 0.0
    %325 = vmatpush1.msra.mxu0 0.0
    %326 = vmatprep.subr.mxu0 0.0
    %327 = vmatpush1.msra.mxu0 0.0
    %328 = vmatprep.subr.mxu0 0.0
    %329 = vmatpush1.msra.mxu0 0.0
    %330 = vmatprep.subr.mxu0 0.0
    %331 = vmatpush1.msra.mxu0 0.0
    %332 = vmatprep.subr.mxu0 0.0
    %333 = vmatpush1.msra.mxu0 0.0
    %334 = vmatprep.subr.mxu0 0.0
    %335 = vmatpush1.msra.mxu0 0.0
    %336 = vmatprep.subr.mxu0 0.0
    %337 = vmatpush1.msra.mxu0 0.0
    %338 = vmatprep.subr.mxu0 0.0
    %339 = vmatpush1.msra.mxu0 0.0
    %340 = vmatprep.subr.mxu0 0.0
    %341 = vmatpush1.msra.mxu0 0.0
    %342 = vmatprep.subr.mxu0 0.0
    %343 = vmatpush1.msra.mxu0 0.0
    %344 = vmatprep.subr.mxu0 0.0
    %345 = vmatpush1.msra.mxu0 0.0
    %346 = vmatprep.subr.mxu0 0.0
    %347 = vmatpush1.msra.mxu0 0.0
    %348 = vmatprep.mubr.f32.mxu0 0.0
    %349 = vmatmul.mubr.f32.gmra.mrb[0].mxu0 %v108
    %v350 = vpop.f32.mrb[0].mxu0
    %v351 = vadd.f32 0.0, %v350
    %v352 = vpop.f32.mrb[0].mxu0
    %353 = vmatprep.mubr.f32.mxu0 0.0
    %354 = vmatmul.mubr.f32.gmra.mrb[0].mxu0 %v111
    %v355 = vpop.f32.mrb[0].mxu0
    %v356 = vadd.f32 0.0, %v355
    %v357 = vpop.f32.mrb[0].mxu0
    %358 = vdwg.mxu0
    %v359 = vadd.f32 %v278, %v351
    %v360 = vadd.f32 %v279, %v356
    %361 = vst.msk [vmem:[#allocation5] sm:$0xff] %vm275, %v359
    %362 = vst.msk [vmem:[#allocation5 + $0x8] sm:$0xff] %vm275, %v360
    // Predicated region
    $region42: #{tpu_custom_call.1} parent=1 // pred_check
      %p363 = pneg %p37
    $region43: #{tpu_custom_call.1} parent=1 // pred_check_branch
      %365 = sbr.rel (%p363) target = $region45
    $region44: #{tpu_custom_call.1} parent=1 // pred_region
      %v366 = vld [vmem:[#allocation3] sm:$0xff]
      %v367 = vld [vmem:[#allocation3 + $0x8] sm:$0xff]
      %v368 = vld [vmem:[%s6] sm:$0x1]
      %v370 = vlaneseq
      %v371 = vshrl.u32 %v370, 7
      %v372 = vsub.s32 0, %v371
      %v373 = vrot.slane %v368, %v372
      %v375 = vadd.f32 %v366, %v373
      %v376 = vadd.f32 %v367, %v373
      %377 = vst.msk [vmem:[#allocation6] sm:$0xff] %vm106, %v375
      %378 = vst.msk [vmem:[#allocation6 + $0x8] sm:$0xff] %vm106, %v376
      %v379 = vld [vmem:[#allocation4] sm:$0xff]
      %v380 = vld [vmem:[#allocation4 + $0x8] sm:$0xff]
      %v381 = vld [vmem:[%s7] sm:$0x1]
      %v383 = vlaneseq
      %v384 = vshrl.u32 %v383, 7
      %v385 = vsub.s32 0, %v384
      %v386 = vrot.slane %v381, %v385
      %v388 = vadd.f32 %v379, %v386
      %v389 = vadd.f32 %v380, %v386
      %390 = vst.msk [vmem:[#allocation8] sm:$0xff] %vm275, %v388
      %391 = vst.msk [vmem:[#allocation8 + $0x8] sm:$0xff] %vm275, %v389
      %v392 = vld [vmem:[#allocation5] sm:$0xff]
      %v393 = vld [vmem:[#allocation5 + $0x8] sm:$0xff]
      %v394 = vld [vmem:[%s8] sm:$0x1]
      %v396 = vlaneseq
      %v397 = vshrl.u32 %v396, 7
      %v398 = vsub.s32 0, %v397
      %v399 = vrot.slane %v394, %v398
      %v401 = vadd.f32 %v392, %v399
      %v402 = vadd.f32 %v393, %v399
      %403 = vst.msk [vmem:[#allocation10] sm:$0xff] %vm275, %v401
      %404 = vst.msk [vmem:[#allocation10 + $0x8] sm:$0xff] %vm275, %v402
    $region45: #{tpu_custom_call.1} parent=1 // pred_fallthru
      _
    // Predicated region
    $region46: #{tpu_custom_call.1} parent=1 // pred_check
      _
    $region47: #{tpu_custom_call.1} parent=1 // pred_check_branch
      %406 = sbr.rel (0) target = $region49
    $region48: #{tpu_custom_call.1} parent=1 // pred_region
      %s408 = ssub.s32 256, 256
      %409 = vsyncadd [#allocation7], %s408
      %s410 = sshll.u32 [#allocation6], 4
      %s411 = int_to_ptr.vmem [resolvable:$true] %s410
      %416 = dma.vmem_to_hbm [thread:$0]  %s411, 256, %s9, [#allocation7], 128, 128, 8
    $region49: #{tpu_custom_call.1} parent=1 // pred_fallthru
      _
    // Predicated region
    $region50: #{tpu_custom_call.1} parent=1 // pred_check
      _
    $region51: #{tpu_custom_call.1} parent=1 // pred_check_branch
      %418 = sbr.rel (0) target = $region53
    $region52: #{tpu_custom_call.1} parent=1 // pred_region
      %s420 = ssub.s32 256, 256
      %421 = vsyncadd [#allocation9], %s420
      %s422 = sshll.u32 [#allocation8], 4
      %s423 = int_to_ptr.vmem [resolvable:$true] %s422
      %428 = dma.vmem_to_hbm [thread:$0]  %s423, 256, %s10, [#allocation9], 128, 128, 8
    $region53: #{tpu_custom_call.1} parent=1 // pred_fallthru
      _
    // Predicated region
    $region54: #{tpu_custom_call.1} parent=1 // pred_check
      _
    $region55: #{tpu_custom_call.1} parent=1 // pred_check_branch
      %430 = sbr.rel (0) target = $region57
    $region56: #{tpu_custom_call.1} parent=1 // pred_region
      %s432 = ssub.s32 256, 256
      %433 = vsyncadd [#allocation9], %s432
      %s434 = sshll.u32 [#allocation10], 4
      %s435 = int_to_ptr.vmem [resolvable:$true] %s434
      %440 = dma.vmem_to_hbm [thread:$0]  %s435, 256, %s11, [#allocation9], 128, 128, 8
    $region57: #{tpu_custom_call.1} parent=1 // pred_fallthru
      _
    // Predicated region
    $region58: #{tpu_custom_call.1} parent=1 // pred_check
      _
    $region59: #{tpu_custom_call.1} parent=1 // pred_check_branch
      %442 = sbr.rel (0) target = $region61
    $region60: #{tpu_custom_call.1} parent=1 // pred_region
      %443 = dma.done [#allocation7], 256
    $region61: #{tpu_custom_call.1} parent=1 // pred_fallthru
      _
    // Predicated region
    $region62: #{tpu_custom_call.1} parent=1 // pred_check
      _
    $region63: #{tpu_custom_call.1} parent=1 // pred_check_branch
      %445 = sbr.rel (0) target = $region65
    $region64: #{tpu_custom_call.1} parent=1 // pred_region
      %446 = dma.done [#allocation9], 256
    $region65: #{tpu_custom_call.1} parent=1 // pred_fallthru
      _
    // Predicated region
    $region66: #{tpu_custom_call.1} parent=1 // pred_check
      _
    $region67: #{tpu_custom_call.1} parent=1 // pred_check_branch
      %448 = sbr.rel (0) target = $region69
    $region68: #{tpu_custom_call.1} parent=1 // pred_region
      %449 = dma.done [#allocation9], 256
    $region69: #{tpu_custom_call.1} parent=1 // pred_fallthru
      _
    %450 = vsyncpa [#allocation7], 1
    %451 = vsyncpa [#allocation9], 1

</llo_original>
